<compile_context>
chip_gen: v5e
topology: v5e:2x2
jax: 0.10.0
libtpu: 0.0.40
codegen_flags: <defaults>
</compile_context>

<pallas_src>
import functools

import jax
import jax.numpy as jnp
from jax.experimental import pallas as pl
from jax.experimental.pallas import tpu as pltpu


def _round_up(x: int, m: int) -> int:
    return (x + m - 1) // m * m


def _textmlp_kernel(x_ref, w1_ref, b1_ref, w2_ref, b2_ref, g_ref, beta_ref, o_ref,
                    *, eps: float, compute_dtype):
    # x_ref: (TM, E) tile of the flattened (B*S, E) input rows.  Load once.
    x = x_ref[...].astype(jnp.float32)
    x_c = x.astype(compute_dtype)

    # linear1: (TM, E) @ (E, H) on the MXU, f32 accumulation; bias + ReLU on the VPU.
    h = jnp.dot(x_c, w1_ref[...], preferred_element_type=jnp.float32)
    h = jnp.maximum(h + b1_ref[...].astype(jnp.float32), 0.0)

    # dropout: identity at inference time (nn.Dropout in eval mode).
    # TODO(synk): training-mode stochastic dropout masking not implemented.

    # linear2: (TM, H) @ (H, E)
    y = jnp.dot(h.astype(compute_dtype), w2_ref[...], preferred_element_type=jnp.float32)
    y = y + b2_ref[...].astype(jnp.float32)

    # LayerNorm over the embed dim (f32, eps=1e-5, elementwise affine),
    # one-pass variance to save a full (TM, E) VPU pass, then fused residual add.
    mean = jnp.mean(y, axis=-1, keepdims=True)
    var = jnp.mean(y * y, axis=-1, keepdims=True) - mean * mean
    inv = jax.lax.rsqrt(var + eps)                                   # (TM, 1)
    yn = (y - mean) * (inv * g_ref[...].astype(jnp.float32)) + beta_ref[...].astype(jnp.float32)

    o_ref[...] = (yn + x).astype(o_ref.dtype)


def _vmem_budget() -> int:
    """Per-generation VMEM budget (~70% of per-core capacity), with a safe fallback."""
    try:
        info = pltpu.get_tpu_info()
        cap = getattr(info, "vmem_capacity_bytes", None)
        if cap:
            return int(cap * 0.7)
    except Exception:
        pass
    return 48 * 1024 * 1024   # conservative: safe on v5e/v6e (128 MiB) and v7x (64 MiB/TC)


def _choose_tm(m_rows, embed_dim, hidden_dim, w_bytes, desired_tm, vmem_budget,
               min_grid_steps=8):
    """Row tile: as large as possible, but (a) no larger than the 8-rounded row count,
    (b) capped so the row grid keeps >= min_grid_steps steps when M is large enough
    (keeps both v7x TensorCores busy with the 'parallel' grid axis), and (c) small
    enough that resident weights + streamed tiles + intermediates fit the VMEM budget."""
    tm = _round_up(max(8, min(desired_tm, _round_up(m_rows, 8))), 8)

    # (b) megacore / pipeline balance: never force the tile below 512 rows for this.
    if m_rows > min_grid_steps * 8:
        cap = max(512, _round_up(pl.cdiv(m_rows, min_grid_steps), 8))
        tm = min(tm, cap)

    # (c) VMEM fit.
    weight_bytes = 2 * embed_dim * hidden_dim * w_bytes + (hidden_dim + 3 * embed_dim) * 4
    per_row = (2 * 2 * embed_dim * 4                       # x + out tiles, double-buffered
               + 4 * max(embed_dim, hidden_dim) * 4        # f32 matmul/LN intermediates
               + 2 * max(embed_dim, hidden_dim) * w_bytes)  # low-precision temporaries
    while tm > 8 and weight_bytes + tm * per_row > vmem_budget:
        tm = _round_up(max(8, tm // 2), 8)
    return tm


def text_mlp(sentence_embeds, params, *, tm=2048, eps=1e-5, use_bf16=True, out_dtype=None):
    """sentence_embeds: (B, S, E). params: dict (see init_params)."""
    B, S, E = sentence_embeds.shape
    H = params["w1"].shape[1]
    M = B * S
    out_dtype = sentence_embeds.dtype if out_dtype is None else out_dtype

    compute_dtype = jnp.bfloat16 if use_bf16 else jnp.float32
    w_bytes = 2 if use_bf16 else 4

    vmem_budget = _vmem_budget()
    tm_eff = _choose_tm(M, E, H, w_bytes, tm, vmem_budget)
    grid = pl.cdiv(M, tm_eff)   # partial last block is masked by Pallas: no pad, no slice

    x2d = sentence_embeds.reshape(M, E)
    w1 = params["w1"].astype(compute_dtype)
    w2 = params["w2"].astype(compute_dtype)

    x_bytes = jnp.dtype(sentence_embeds.dtype).itemsize
    o_bytes = jnp.dtype(out_dtype).itemsize
    footprint = (2 * E * H * w_bytes + (H + 3 * E) * 4            # resident params
                 + 2 * tm_eff * E * x_bytes                       # x tile, double-buffered
                 + 2 * tm_eff * E * o_bytes                       # out tile, double-buffered
                 + 4 * tm_eff * max(E, H) * 4                     # f32 intermediates (h, y, LN temps)
                 + 2 * tm_eff * max(E, H) * w_bytes)              # bf16/f32 matmul operand temps
    vmem_limit = int(min(vmem_budget, max(32 * 1024 * 1024, footprint + (16 << 20))))

    kernel = functools.partial(_textmlp_kernel, eps=eps, compute_dtype=compute_dtype)

    # Whole-array, VMEM-resident (single-buffered) specs for the grid-invariant params.
    resident = pl.BlockSpec(memory_space=pltpu.MemorySpace.VMEM)

    out2d = pl.pallas_call(
        kernel,
        out_shape=jax.ShapeDtypeStruct((M, E), out_dtype),
        grid_spec=pltpu.PrefetchScalarGridSpec(
            num_scalar_prefetch=0,
            grid=(grid,),
            in_specs=[
                pl.BlockSpec((tm_eff, E), lambda i: (i, 0)),   # x rows (pipelined)
                resident,                                      # W1 (E, H)
                resident,                                      # b1 (1, H)
                resident,                                      # W2 (H, E)
                resident,                                      # b2 (1, E)
                resident,                                      # LN gamma (1, E)
                resident,                                      # LN beta  (1, E)
            ],
            out_specs=pl.BlockSpec((tm_eff, E), lambda i: (i, 0)),
        ),
        compiler_params=pltpu.CompilerParams(
            dimension_semantics=("parallel",),     # shard row grid across TCs (v7x)
            vmem_limit_bytes=vmem_limit,
        ),
    )(x2d, w1, params["b1"], w2, params["b2"], params["gamma"], params["beta"])

    return out2d.reshape(B, S, E)


def init_params(key, embed_dim, hidden_dim):
    """Deterministic synthetic init. PyTorch Linear is y = x @ W.T + b with W:(out,in);
    weights are stored pre-transposed as (in, out)."""
    k1, k2, k3, k4 = jax.random.split(key, 4)
    s1 = 1.0 / jnp.sqrt(embed_dim)
    s2 = 1.0 / jnp.sqrt(hidden_dim)
    return {
        "w1": jax.random.uniform(k1, (embed_dim, hidden_dim), jnp.float32, -s1, s1),
        "b1": jax.random.uniform(k2, (1, hidden_dim), jnp.float32, -s1, s1),
        "w2": jax.random.uniform(k3, (hidden_dim, embed_dim), jnp.float32, -s2, s2),
        "b2": jax.random.uniform(k4, (1, embed_dim), jnp.float32, -s2, s2),
        "gamma": jnp.ones((1, embed_dim), jnp.float32),   # LayerNorm default init
        "beta": jnp.zeros((1, embed_dim), jnp.float32),
    }


def _reference(x, p, eps=1e-5):
    """Pure-JAX f32 reference."""
    h = jnp.maximum(x @ p["w1"] + p["b1"], 0.0)
    y = h @ p["w2"] + p["b2"]
    mean = jnp.mean(y, axis=-1, keepdims=True)
    var = jnp.mean((y - mean) ** 2, axis=-1, keepdims=True)
    yn = (y - mean) * jax.lax.rsqrt(var + eps)
    return yn * p["gamma"] + p["beta"] + x


if __name__ == "__main__":
    # Module defaults: embed_dim=256, hidden_dim=256 (lane-dense multiples of 128).
    E, Hd = 256, 256
    key = jax.random.PRNGKey(0)
    kx1, kx2, kp = jax.random.split(key, 3)
    params = init_params(kp, E, Hd)

    # Case 1: default (large-tile) config, bf16 MXU path, small shape.
    B, S = 2, 8
    x = jax.random.normal(kx1, (B, S, E), jnp.float32)
    out = jax.block_until_ready(text_mlp(x, params))
    ref = _reference(x, params)
    assert out.shape == (B, S, E)
    assert jnp.allclose(out, ref, atol=5e-2, rtol=5e-2), \
        f"bf16 path max err {float(jnp.max(jnp.abs(out - ref)))}"

    # Case 2: f32 path, ragged row count (M=111 -> exercises the masked partial block,
    # multi-step grid, no pad / no output slice).
    B2, S2 = 3, 37
    x2 = jax.random.normal(kx2, (B2, S2, E), jnp.float32)
    out2 = jax.block_until_ready(text_mlp(x2, params, tm=64, use_bf16=False))
    ref2 = _reference(x2, params)
    assert out2.shape == (B2, S2, E)
    assert jnp.allclose(out2, ref2, atol=1e-3, rtol=1e-3), \
        f"f32 path max err {float(jnp.max(jnp.abs(out2 - ref2)))}"

    print("KERNEL_OK")
</pallas_src>

<mosaic_0001>
module attributes {stable_mosaic.version = 11 : i64} {
  func.func @_textmlp_kernel(%arg0: i32, %arg1: memref<16x256xf32, #tpu.memory_space<vmem>>, %arg2: memref<256x256xbf16, #tpu.memory_space<vmem>>, %arg3: memref<1x256xf32, #tpu.memory_space<vmem>>, %arg4: memref<256x256xbf16, #tpu.memory_space<vmem>>, %arg5: memref<1x256xf32, #tpu.memory_space<vmem>>, %arg6: memref<1x256xf32, #tpu.memory_space<vmem>>, %arg7: memref<1x256xf32, #tpu.memory_space<vmem>>, %arg8: memref<16x256xf32, #tpu.memory_space<vmem>>) attributes {dimension_semantics = [#tpu.dimension_semantics<parallel>], iteration_bounds = array<i64: 1>, scalar_prefetch = 0 : i64, scratch_operands = 0 : i64, tpu.core_type = #tpu.core_type<tc>, window_params = [{transform_indices = @transform_0, window_bounds = array<i64: 16, 256>}, {pipeline_mode = #tpu.pipeline_mode<synchronous>, transform_indices = @transform_1, window_bounds = array<i64: 256, 256>}, {pipeline_mode = #tpu.pipeline_mode<synchronous>, transform_indices = @transform_2, window_bounds = array<i64: 1, 256>}, {pipeline_mode = #tpu.pipeline_mode<synchronous>, transform_indices = @transform_3, window_bounds = array<i64: 256, 256>}, {pipeline_mode = #tpu.pipeline_mode<synchronous>, transform_indices = @transform_4, window_bounds = array<i64: 1, 256>}, {pipeline_mode = #tpu.pipeline_mode<synchronous>, transform_indices = @transform_5, window_bounds = array<i64: 1, 256>}, {pipeline_mode = #tpu.pipeline_mode<synchronous>, transform_indices = @transform_6, window_bounds = array<i64: 1, 256>}, {transform_indices = @transform_7, window_bounds = array<i64: 16, 256>}]} {
    %c0 = arith.constant 0 : index
    %c0_0 = arith.constant 0 : index
    %0 = vector.load %arg1[%c0, %c0_0] : memref<16x256xf32, #tpu.memory_space<vmem>>, vector<16x256xf32>
    %1 = arith.truncf %0 : vector<16x256xf32> to vector<16x256xbf16>
    %c0_1 = arith.constant 0 : index
    %c0_2 = arith.constant 0 : index
    %2 = vector.load %arg2[%c0_1, %c0_2] : memref<256x256xbf16, #tpu.memory_space<vmem>>, vector<256x256xbf16>
    %cst = arith.constant dense<0.000000e+00> : vector<16x256xf32>
    %3 = tpu.matmul %1, %2, %cst {dimension_numbers = #tpu.dot_dimension_numbers<[1], [0], [0], [1], [0, 0, 1, 1], [], []>} : vector<16x256xbf16>, vector<256x256xbf16>, vector<16x256xf32> -> vector<16x256xf32>
    %c0_3 = arith.constant 0 : index
    %c0_4 = arith.constant 0 : index
    %4 = vector.load %arg3[%c0_3, %c0_4] : memref<1x256xf32, #tpu.memory_space<vmem>>, vector<1x256xf32>
    %5 = vector.broadcast %4 : vector<1x256xf32> to vector<16x256xf32>
    %6 = arith.addf %3, %5 : vector<16x256xf32>
    %cst_5 = arith.constant 0.000000e+00 : f32
    %7 = vector.broadcast %cst_5 : f32 to vector<16x256xf32>
    %8 = arith.maximumf %6, %7 : vector<16x256xf32>
    %9 = arith.truncf %8 : vector<16x256xf32> to vector<16x256xbf16>
    %c0_6 = arith.constant 0 : index
    %c0_7 = arith.constant 0 : index
    %10 = vector.load %arg4[%c0_6, %c0_7] : memref<256x256xbf16, #tpu.memory_space<vmem>>, vector<256x256xbf16>
    %cst_8 = arith.constant dense<0.000000e+00> : vector<16x256xf32>
    %11 = tpu.matmul %9, %10, %cst_8 {dimension_numbers = #tpu.dot_dimension_numbers<[1], [0], [0], [1], [0, 0, 1, 1], [], []>} : vector<16x256xbf16>, vector<256x256xbf16>, vector<16x256xf32> -> vector<16x256xf32>
    %c0_9 = arith.constant 0 : index
    %c0_10 = arith.constant 0 : index
    %12 = vector.load %arg5[%c0_9, %c0_10] : memref<1x256xf32, #tpu.memory_space<vmem>>, vector<1x256xf32>
    %13 = vector.broadcast %12 : vector<1x256xf32> to vector<16x256xf32>
    %14 = arith.addf %11, %13 : vector<16x256xf32>
    %cst_11 = arith.constant dense<0.000000e+00> : vector<16xf32>
    %15 = vector.multi_reduction <add>, %14, %cst_11 [1] : vector<16x256xf32> to vector<16xf32>
    %16 = vector.shape_cast %15 : vector<16xf32> to vector<16x1xf32>
    %cst_12 = arith.constant 2.560000e+02 : f32
    %17 = vector.broadcast %cst_12 : f32 to vector<16x1xf32>
    %18 = arith.divf %16, %17 : vector<16x1xf32>
    %19 = arith.mulf %14, %14 : vector<16x256xf32>
    %cst_13 = arith.constant dense<0.000000e+00> : vector<16xf32>
    %20 = vector.multi_reduction <add>, %19, %cst_13 [1] : vector<16x256xf32> to vector<16xf32>
    %21 = vector.shape_cast %20 : vector<16xf32> to vector<16x1xf32>
    %cst_14 = arith.constant 2.560000e+02 : f32
    %22 = vector.broadcast %cst_14 : f32 to vector<16x1xf32>
    %23 = arith.divf %21, %22 : vector<16x1xf32>
    %24 = arith.mulf %18, %18 : vector<16x1xf32>
    %25 = arith.subf %23, %24 : vector<16x1xf32>
    %cst_15 = arith.constant 9.99999974E-6 : f32
    %26 = vector.broadcast %cst_15 : f32 to vector<16x1xf32>
    %27 = arith.addf %25, %26 : vector<16x1xf32>
    %28 = math.rsqrt %27 : vector<16x1xf32>
    %29 = vector.broadcast %18 : vector<16x1xf32> to vector<16x256xf32>
    %30 = arith.subf %14, %29 : vector<16x256xf32>
    %c0_16 = arith.constant 0 : index
    %c0_17 = arith.constant 0 : index
    %31 = vector.load %arg6[%c0_16, %c0_17] : memref<1x256xf32, #tpu.memory_space<vmem>>, vector<1x256xf32>
    %32 = vector.broadcast %28 : vector<16x1xf32> to vector<16x256xf32>
    %33 = vector.broadcast %31 : vector<1x256xf32> to vector<16x256xf32>
    %34 = arith.mulf %32, %33 : vector<16x256xf32>
    %35 = arith.mulf %30, %34 : vector<16x256xf32>
    %c0_18 = arith.constant 0 : index
    %c0_19 = arith.constant 0 : index
    %36 = vector.load %arg7[%c0_18, %c0_19] : memref<1x256xf32, #tpu.memory_space<vmem>>, vector<1x256xf32>
    %37 = vector.broadcast %36 : vector<1x256xf32> to vector<16x256xf32>
    %38 = arith.addf %35, %37 : vector<16x256xf32>
    %39 = arith.addf %38, %0 : vector<16x256xf32>
    %c0_20 = arith.constant 0 : index
    %c0_21 = arith.constant 0 : index
    %40 = vector.load %arg8[%c0_20, %c0_21] : memref<16x256xf32, #tpu.memory_space<vmem>>, vector<16x256xf32>
    tpu.vector_store %arg8[%c0_20, %c0_21], %39 {strides = array<i32>} : memref<16x256xf32, #tpu.memory_space<vmem>>, vector<16x256xf32>,
    return
  }
  func.func @transform_0(%arg0: i32) -> (i32, i32) {
    %c0_i32 = arith.constant 0 : i32
    %c0_i32_0 = arith.constant 0 : i32
    return %arg0, %c0_i32 : i32, i32
  }
  func.func @transform_1(%arg0: i32) -> (i32, i32) {
    %c0_i32 = arith.constant 0 : i32
    %c0_i32_0 = arith.constant 0 : i32
    %c0_i32_1 = arith.constant 0 : i32
    return %c0_i32, %c0_i32_0 : i32, i32
  }
  func.func @transform_2(%arg0: i32) -> (i32, i32) {
    %c0_i32 = arith.constant 0 : i32
    %c0_i32_0 = arith.constant 0 : i32
    %c0_i32_1 = arith.constant 0 : i32
    return %c0_i32, %c0_i32_0 : i32, i32
  }
  func.func @transform_3(%arg0: i32) -> (i32, i32) {
    %c0_i32 = arith.constant 0 : i32
    %c0_i32_0 = arith.constant 0 : i32
    %c0_i32_1 = arith.constant 0 : i32
    return %c0_i32, %c0_i32_0 : i32, i32
  }
  func.func @transform_4(%arg0: i32) -> (i32, i32) {
    %c0_i32 = arith.constant 0 : i32
    %c0_i32_0 = arith.constant 0 : i32
    %c0_i32_1 = arith.constant 0 : i32
    return %c0_i32, %c0_i32_0 : i32, i32
  }
  func.func @transform_5(%arg0: i32) -> (i32, i32) {
    %c0_i32 = arith.constant 0 : i32
    %c0_i32_0 = arith.constant 0 : i32
    %c0_i32_1 = arith.constant 0 : i32
    return %c0_i32, %c0_i32_0 : i32, i32
  }
  func.func @transform_6(%arg0: i32) -> (i32, i32) {
    %c0_i32 = arith.constant 0 : i32
    %c0_i32_0 = arith.constant 0 : i32
    %c0_i32_1 = arith.constant 0 : i32
    return %c0_i32, %c0_i32_0 : i32, i32
  }
  func.func @transform_7(%arg0: i32) -> (i32, i32) {
    %c0_i32 = arith.constant 0 : i32
    %c0_i32_0 = arith.constant 0 : i32
    return %arg0, %c0_i32 : i32, i32
  }
}

</mosaic_0001>

<llo_original>
// kernel: tpu_custom_call.1
$region0: #{tpu_custom_call.1}
  #allocation0 [shape = 'u32[]', space=smem, size = 0x4, offset = 0x4, fixed_abs, tag = 'smem constant byte address 0x4 - core index']
  #allocation1 [shape = 'u32[72,128]{1,0:T(1,128)}', space=vmem, size = 0x9000, scoped, tag = 'internal scratch']
  %s0 = inlined_call_operand.hbm [shape: f32[16,256], index: 0, kind: input, shape index: {}]
  %s1 = inlined_call_operand.hbm [shape: bf16[256,256], index: 1, kind: input, shape index: {}]
  %s2 = inlined_call_operand.hbm [shape: f32[1,256], index: 2, kind: input, shape index: {}]
  %s3 = inlined_call_operand.hbm [shape: bf16[256,256], index: 3, kind: input, shape index: {}]
  %s4 = inlined_call_operand.vmem [shape: f32[1,256], index: 4, kind: input, shape index: {}]
  %s5 = inlined_call_operand.vmem [shape: f32[1,256], index: 5, kind: input, shape index: {}]
  %s6 = inlined_call_operand.hbm [shape: f32[1,256], index: 6, kind: input, shape index: {}]
  %s7 = inlined_call_operand.hbm [shape: f32[16,256], index: 7, kind: output, shape index: {}]
  %s8 = sld [smem:[#allocation0]]
  $region58: #{tpu_custom_call.1} parent=0
    _
  %s10 = ssub.s32 1, %s8
  %s11 = scalar_select 0, %s10, %s8
  $region1: #{tpu_custom_call.1} parent=0
    #allocation2 [shape = 'u8[16384]{0}', space=vmem, size = 0x4000, scoped, tag = 'input window, operand 0, single buffered']
    #allocation3 [shape = 's32[1]{0}', space=sflag, size = 0x4, scoped, tag = 'scoped memory for tpu_custom_call.1']
    #allocation4 [shape = 's32[1]{0}', space=sflag, size = 0x4, scoped, tag = 'scoped memory for tpu_custom_call.1']
    #allocation5 [shape = 'u8[131072]{0}', space=vmem, size = 0x20000, scoped, tag = 'input window, operand 1, single buffered']
    #allocation6 [shape = 's32[1]{0}', space=sflag, size = 0x4, scoped, tag = 'scoped memory for tpu_custom_call.1']
    #allocation7 [shape = 'u8[1024]{0}', space=vmem, size = 0x400, scoped, tag = 'input window, operand 2, single buffered']
    #allocation8 [shape = 'u8[131072]{0}', space=vmem, size = 0x20000, scoped, tag = 'input window, operand 3, single buffered']
    #allocation9 [shape = 's32[1]{0}', space=sflag, size = 0x4, scoped, tag = 'scoped memory for tpu_custom_call.1']
    #allocation10 [shape = 'u8[1024]{0}', space=vmem, size = 0x400, scoped, tag = 'input window, operand 6, single buffered']
    #allocation11 [shape = 'u8[16384]{0}', space=vmem, size = 0x4000, scoped, tag = 'output window, operand 0, single buffered']
    %12 = vsyncpa [#allocation3], 0
    %13 = vsyncpa [#allocation6], 0
    %14 = vsyncpa [#allocation9], 0
    %15 = vsyncpa [#allocation4], 0
    // Predicated region
    $region2: #{tpu_custom_call.1} parent=1 // pred_check
      _
    $region3: #{tpu_custom_call.1} parent=1 // pred_check_branch
      %17 = sbr.rel (0) target = $region5
    $region4: #{tpu_custom_call.1} parent=1 // pred_region
      %19 = vsyncadd [#allocation3], 0
      %s20 = sshll.u32 %s0, 4
      %s21 = int_to_ptr.hbm [resolvable:$true] %s20
      %s22 = sshll.u32 [#allocation2], 4
      %s23 = int_to_ptr.vmem [resolvable:$true] %s22
      %28 = dma.hbm_to_vmem [thread:$0]  %s21, 512, %s23, [#allocation3], 256, 256, 16
    $region5: #{tpu_custom_call.1} parent=1 // pred_fallthru
      _
    // Predicated region
    $region6: #{tpu_custom_call.1} parent=1 // pred_check
      _
    $region7: #{tpu_custom_call.1} parent=1 // pred_check_branch
      %30 = sbr.rel (0) target = $region9
    $region8: #{tpu_custom_call.1} parent=1 // pred_region
      %32 = vsyncadd [#allocation6], 0
      %s33 = sshll.u32 %s1, 4
      %s34 = int_to_ptr.hbm [resolvable:$true] %s33
      %s35 = sshll.u32 [#allocation5], 4
      %s36 = int_to_ptr.vmem [resolvable:$true] %s35
      %41 = dma.hbm_to_vmem [thread:$0]  %s34, 4096, %s36, [#allocation6], 128, 128, 8
    $region9: #{tpu_custom_call.1} parent=1 // pred_fallthru
      _
    // Predicated region
    $region10: #{tpu_custom_call.1} parent=1 // pred_check
      _
    $region11: #{tpu_custom_call.1} parent=1 // pred_check_branch
      %43 = sbr.rel (0) target = $region13
    $region12: #{tpu_custom_call.1} parent=1 // pred_region
      %45 = vsyncadd [#allocation6], 0
      %s47 = sshll.u32 %s2, 4
      %s48 = int_to_ptr.hbm [resolvable:$true] %s47
      %s49 = sshll.u32 [#allocation7], 4
      %s50 = int_to_ptr.vmem [resolvable:$true] %s49
      %52 = dma.hbm_to_vmem [thread:$0]  %s48, 32, %s50, [#allocation6]
    $region13: #{tpu_custom_call.1} parent=1 // pred_fallthru
      _
    // Predicated region
    $region14: #{tpu_custom_call.1} parent=1 // pred_check
      _
    $region15: #{tpu_custom_call.1} parent=1 // pred_check_branch
      %54 = sbr.rel (0) target = $region17
    $region16: #{tpu_custom_call.1} parent=1 // pred_region
      %56 = vsyncadd [#allocation9], 0
      %s57 = sshll.u32 %s3, 4
      %s58 = int_to_ptr.hbm [resolvable:$true] %s57
      %s59 = sshll.u32 [#allocation8], 4
      %s60 = int_to_ptr.vmem [resolvable:$true] %s59
      %65 = dma.hbm_to_vmem [thread:$0]  %s58, 4096, %s60, [#allocation9], 128, 128, 8
    $region17: #{tpu_custom_call.1} parent=1 // pred_fallthru
      _
    // Predicated region
    $region18: #{tpu_custom_call.1} parent=1 // pred_check
      _
    $region19: #{tpu_custom_call.1} parent=1 // pred_check_branch
      %67 = sbr.rel (0) target = $region21
    $region20: #{tpu_custom_call.1} parent=1 // pred_region
      _
    $region21: #{tpu_custom_call.1} parent=1 // pred_fallthru
      _
    // Predicated region
    $region22: #{tpu_custom_call.1} parent=1 // pred_check
      _
    $region23: #{tpu_custom_call.1} parent=1 // pred_check_branch
      %69 = sbr.rel (0) target = $region25
    $region24: #{tpu_custom_call.1} parent=1 // pred_region
      _
    $region25: #{tpu_custom_call.1} parent=1 // pred_fallthru
      _
    // Predicated region
    $region26: #{tpu_custom_call.1} parent=1 // pred_check
      _
    $region27: #{tpu_custom_call.1} parent=1 // pred_check_branch
      %71 = sbr.rel (0) target = $region29
    $region28: #{tpu_custom_call.1} parent=1 // pred_region
      %73 = vsyncadd [#allocation9], 0
      %s75 = sshll.u32 %s6, 4
      %s76 = int_to_ptr.hbm [resolvable:$true] %s75
      %s77 = sshll.u32 [#allocation10], 4
      %s78 = int_to_ptr.vmem [resolvable:$true] %s77
      %80 = dma.hbm_to_vmem [thread:$0]  %s76, 32, %s78, [#allocation9]
    $region29: #{tpu_custom_call.1} parent=1 // pred_fallthru
      _
    // Predicated region
    $region30: #{tpu_custom_call.1} parent=1 // pred_check
      _
    $region31: #{tpu_custom_call.1} parent=1 // pred_check_branch
      %82 = sbr.rel (0) target = $region33
    $region32: #{tpu_custom_call.1} parent=1 // pred_region
      %84 = dma.done [#allocation3], 512
    $region33: #{tpu_custom_call.1} parent=1 // pred_fallthru
      _
    // Predicated region
    $region34: #{tpu_custom_call.1} parent=1 // pred_check
      _
    $region35: #{tpu_custom_call.1} parent=1 // pred_check_branch
      %86 = sbr.rel (0) target = $region37
    $region36: #{tpu_custom_call.1} parent=1 // pred_region
      %88 = dma.done [#allocation6], 4096
    $region37: #{tpu_custom_call.1} parent=1 // pred_fallthru
      _
    // Predicated region
    $region38: #{tpu_custom_call.1} parent=1 // pred_check
      _
    $region39: #{tpu_custom_call.1} parent=1 // pred_check_branch
      %90 = sbr.rel (0) target = $region41
    $region40: #{tpu_custom_call.1} parent=1 // pred_region
      %92 = dma.done [#allocation6], 32
    $region41: #{tpu_custom_call.1} parent=1 // pred_fallthru
      _
    // Predicated region
    $region42: #{tpu_custom_call.1} parent=1 // pred_check
      _
    $region43: #{tpu_custom_call.1} parent=1 // pred_check_branch
      %94 = sbr.rel (0) target = $region45
    $region44: #{tpu_custom_call.1} parent=1 // pred_region
      %96 = dma.done [#allocation9], 4096
    $region45: #{tpu_custom_call.1} parent=1 // pred_fallthru
      _
    // Predicated region
    $region46: #{tpu_custom_call.1} parent=1 // pred_check
      _
    $region47: #{tpu_custom_call.1} parent=1 // pred_check_branch
      %98 = sbr.rel (0) target = $region49
    $region48: #{tpu_custom_call.1} parent=1 // pred_region
      %100 = dma.done [#allocation9], 32
    $region49: #{tpu_custom_call.1} parent=1 // pred_fallthru
      _
    %v101 = vld [vmem:[#allocation2] sm:$0xff]
    %v102 = vld [vmem:[#allocation2 + $0x8] sm:$0xff]
    %v103 = vld [vmem:[#allocation2 + $0x10] sm:$0xff]
    %v104 = vld [vmem:[#allocation2 + $0x18] sm:$0xff]
    %v105 = vpack.c.bf16 %v103, %v101
    %v106 = vpack.c.bf16 %v104, %v102
    %v107 = vld [vmem:[#allocation5] sm:$0xff]
    %v108 = vld [vmem:[#allocation5 + $0x8] sm:$0xff]
    %v109 = vld [vmem:[#allocation5 + $0x10] sm:$0xff]
    %v110 = vld [vmem:[#allocation5 + $0x18] sm:$0xff]
    %v111 = vld [vmem:[#allocation5 + $0x20] sm:$0xff]
    %v112 = vld [vmem:[#allocation5 + $0x28] sm:$0xff]
    %v113 = vld [vmem:[#allocation5 + $0x30] sm:$0xff]
    %v114 = vld [vmem:[#allocation5 + $0x38] sm:$0xff]
    %v115 = vld [vmem:[#allocation5 + $0x40] sm:$0xff]
    %v116 = vld [vmem:[#allocation5 + $0x48] sm:$0xff]
    %v117 = vld [vmem:[#allocation5 + $0x50] sm:$0xff]
    %v118 = vld [vmem:[#allocation5 + $0x58] sm:$0xff]
    %v119 = vld [vmem:[#allocation5 + $0x60] sm:$0xff]
    %v120 = vld [vmem:[#allocation5 + $0x68] sm:$0xff]
    %v121 = vld [vmem:[#allocation5 + $0x70] sm:$0xff]
    %v122 = vld [vmem:[#allocation5 + $0x78] sm:$0xff]
    %v123 = vld [vmem:[#allocation5 + $0x80] sm:$0xff]
    %v124 = vld [vmem:[#allocation5 + $0x88] sm:$0xff]
    %v125 = vld [vmem:[#allocation5 + $0x90] sm:$0xff]
    %v126 = vld [vmem:[#allocation5 + $0x98] sm:$0xff]
    %v127 = vld [vmem:[#allocation5 + $0xa0] sm:$0xff]
    %v128 = vld [vmem:[#allocation5 + $0xa8] sm:$0xff]
    %v129 = vld [vmem:[#allocation5 + $0xb0] sm:$0xff]
    %v130 = vld [vmem:[#allocation5 + $0xb8] sm:$0xff]
    %v131 = vld [vmem:[#allocation5 + $0xc0] sm:$0xff]
    %v132 = vld [vmem:[#allocation5 + $0xc8] sm:$0xff]
    %v133 = vld [vmem:[#allocation5 + $0xd0] sm:$0xff]
    %v134 = vld [vmem:[#allocation5 + $0xd8] sm:$0xff]
    %v135 = vld [vmem:[#allocation5 + $0xe0] sm:$0xff]
    %v136 = vld [vmem:[#allocation5 + $0xe8] sm:$0xff]
    %v137 = vld [vmem:[#allocation5 + $0xf0] sm:$0xff]
    %v138 = vld [vmem:[#allocation5 + $0xf8] sm:$0xff]
    %v139 = vld [vmem:[#allocation7] sm:$0x3]
    %v141 = vperm.slane %v139, 0
    %v142 = vperm.slane %v139, 1
    %v177 = vunpack.c.l.b16 %v107
    %v178 = vunpack.c.h.b16 %v107
    %v179 = vunpack.c.l.b16 %v108
    %v180 = vunpack.c.h.b16 %v108
    %v181 = vunpack.c.l.b16 %v109
    %v182 = vunpack.c.h.b16 %v109
    %v183 = vunpack.c.l.b16 %v110
    %v184 = vunpack.c.h.b16 %v110
    %v185 = vunpack.c.l.b16 %v111
    %v186 = vunpack.c.h.b16 %v111
    %v187 = vunpack.c.l.b16 %v112
    %v188 = vunpack.c.h.b16 %v112
    %v189 = vunpack.c.l.b16 %v113
    %v190 = vunpack.c.h.b16 %v113
    %v191 = vunpack.c.l.b16 %v114
    %v192 = vunpack.c.h.b16 %v114
    %v193 = vunpack.c.l.b16 %v115
    %v194 = vunpack.c.h.b16 %v115
    %v195 = vunpack.c.l.b16 %v116
    %v196 = vunpack.c.h.b16 %v116
    %v197 = vunpack.c.l.b16 %v117
    %v198 = vunpack.c.h.b16 %v117
    %v199 = vunpack.c.l.b16 %v118
    %v200 = vunpack.c.h.b16 %v118
    %v201 = vunpack.c.l.b16 %v119
    %v202 = vunpack.c.h.b16 %v119
    %v203 = vunpack.c.l.b16 %v120
    %v204 = vunpack.c.h.b16 %v120
    %v205 = vunpack.c.l.b16 %v121
    %v206 = vunpack.c.h.b16 %v121
    %v207 = vunpack.c.l.b16 %v122
    %v208 = vunpack.c.h.b16 %v122
    %v209 = vunpack.c.l.b16 %v123
    %v210 = vunpack.c.h.b16 %v123
    %v211 = vunpack.c.l.b16 %v124
    %v212 = vunpack.c.h.b16 %v124
    %v213 = vunpack.c.l.b16 %v125
    %v214 = vunpack.c.h.b16 %v125
    %v215 = vunpack.c.l.b16 %v126
    %v216 = vunpack.c.h.b16 %v126
    %v217 = vunpack.c.l.b16 %v127
    %v218 = vunpack.c.h.b16 %v127
    %v219 = vunpack.c.l.b16 %v128
    %v220 = vunpack.c.h.b16 %v128
    %v221 = vunpack.c.l.b16 %v129
    %v222 = vunpack.c.h.b16 %v129
    %v223 = vunpack.c.l.b16 %v130
    %v224 = vunpack.c.h.b16 %v130
    %v225 = vunpack.c.l.b16 %v131
    %v226 = vunpack.c.h.b16 %v131
    %v227 = vunpack.c.l.b16 %v132
    %v228 = vunpack.c.h.b16 %v132
    %v229 = vunpack.c.l.b16 %v133
    %v230 = vunpack.c.h.b16 %v133
    %v231 = vunpack.c.l.b16 %v134
    %v232 = vunpack.c.h.b16 %v134
    %v233 = vunpack.c.l.b16 %v135
    %v234 = vunpack.c.h.b16 %v135
    %v235 = vunpack.c.l.b16 %v136
    %v236 = vunpack.c.h.b16 %v136
    %v237 = vunpack.c.l.b16 %v137
    %v238 = vunpack.c.h.b16 %v137
    %v239 = vunpack.c.l.b16 %v138
    %v240 = vunpack.c.h.b16 %v138
    %v241 = vpack.c.b16 %v179, %v177
    %v242 = vpack.c.b16 %v180, %v178
    %v243 = vpack.c.b16 %v183, %v181
    %v244 = vpack.c.b16 %v184, %v182
    %v245 = vpack.c.b16 %v187, %v185
    %v246 = vpack.c.b16 %v188, %v186
    %v247 = vpack.c.b16 %v191, %v189
    %v248 = vpack.c.b16 %v192, %v190
    %v249 = vpack.c.b16 %v195, %v193
    %v250 = vpack.c.b16 %v196, %v194
    %v251 = vpack.c.b16 %v199, %v197
    %v252 = vpack.c.b16 %v200, %v198
    %v253 = vpack.c.b16 %v203, %v201
    %v254 = vpack.c.b16 %v204, %v202
    %v255 = vpack.c.b16 %v207, %v205
    %v256 = vpack.c.b16 %v208, %v206
    %v257 = vpack.c.b16 %v211, %v209
    %v258 = vpack.c.b16 %v212, %v210
    %v259 = vpack.c.b16 %v215, %v213
    %v260 = vpack.c.b16 %v216, %v214
    %v261 = vpack.c.b16 %v219, %v217
    %v262 = vpack.c.b16 %v220, %v218
    %v263 = vpack.c.b16 %v223, %v221
    %v264 = vpack.c.b16 %v224, %v222
    %v265 = vpack.c.b16 %v227, %v225
    %v266 = vpack.c.b16 %v228, %v226
    %v267 = vpack.c.b16 %v231, %v229
    %v268 = vpack.c.b16 %v232, %v230
    %v269 = vpack.c.b16 %v235, %v233
    %v270 = vpack.c.b16 %v236, %v234
    %v271 = vpack.c.b16 %v239, %v237
    %v272 = vpack.c.b16 %v240, %v238
    %305 = vmatpush.bf16.msra.mxu0 %v255
    %306 = vmatpush.bf16.msra.mxu0 %v253
    %307 = vmatpush.bf16.msra.mxu0 %v251
    %308 = vmatpush.bf16.msra.mxu0 %v249
    %309 = vmatpush.bf16.msra.mxu0 %v247
    %310 = vmatpush.bf16.msra.mxu0 %v245
    %311 = vmatpush.bf16.msra.mxu0 %v243
    %312 = vmatpush.bf16.msra.mxu0 %v241
    %313 = vmatmul.bf16.gmra.mxu0 %v105
    %v314 = vpop.f32.mrf.mxu0
    %v315 = vadd.f32 %v141, %v314
    %v316 = vpop.f32.mrf.mxu0
    %v317 = vadd.f32 %v141, %v316
    %318 = vdwg.mxu0
    %319 = vmatpush.bf16.msra.mxu0 %v271
    %320 = vmatpush.bf16.msra.mxu0 %v269
    %321 = vmatpush.bf16.msra.mxu0 %v267
    %322 = vmatpush.bf16.msra.mxu0 %v265
    %323 = vmatpush.bf16.msra.mxu0 %v263
    %324 = vmatpush.bf16.msra.mxu0 %v261
    %325 = vmatpush.bf16.msra.mxu0 %v259
    %326 = vmatpush.bf16.msra.mxu0 %v257
    %327 = vmatmul.bf16.gmra.mxu0 %v106
    %v328 = vpop.f32.mrf.mxu0
    %v329 = vadd.f32 %v315, %v328
    %v330 = vpop.f32.mrf.mxu0
    %v331 = vadd.f32 %v317, %v330
    %332 = vdwg.mxu0
    %333 = vmatpush.bf16.msra.mxu0 %v256
    %334 = vmatpush.bf16.msra.mxu0 %v254
    %335 = vmatpush.bf16.msra.mxu0 %v252
    %336 = vmatpush.bf16.msra.mxu0 %v250
    %337 = vmatpush.bf16.msra.mxu0 %v248
    %338 = vmatpush.bf16.msra.mxu0 %v246
    %339 = vmatpush.bf16.msra.mxu0 %v244
    %340 = vmatpush.bf16.msra.mxu0 %v242
    %341 = vmatmul.bf16.gmra.mxu0 %v105
    %v342 = vpop.f32.mrf.mxu0
    %v343 = vadd.f32 %v142, %v342
    %v344 = vpop.f32.mrf.mxu0
    %v345 = vadd.f32 %v142, %v344
    %346 = vdwg.mxu0
    %347 = vmatpush.bf16.msra.mxu0 %v272
    %348 = vmatpush.bf16.msra.mxu0 %v270
    %349 = vmatpush.bf16.msra.mxu0 %v268
    %350 = vmatpush.bf16.msra.mxu0 %v266
    %351 = vmatpush.bf16.msra.mxu0 %v264
    %352 = vmatpush.bf16.msra.mxu0 %v262
    %353 = vmatpush.bf16.msra.mxu0 %v260
    %354 = vmatpush.bf16.msra.mxu0 %v258
    %355 = vmatmul.bf16.gmra.mxu0 %v106
    %v356 = vpop.f32.mrf.mxu0
    %v357 = vadd.f32 %v343, %v356
    %v358 = vpop.f32.mrf.mxu0
    %v359 = vadd.f32 %v345, %v358
    %360 = vdwg.mxu0
    %v361 = vmax.f32 %v329, 0.0
    %v362 = vmax.f32 %v357, 0.0
    %v363 = vmax.f32 %v331, 0.0
    %v364 = vmax.f32 %v359, 0.0
    %v365 = vpack.c.bf16 %v363, %v361
    %v366 = vpack.c.bf16 %v364, %v362
    %v367 = vld [vmem:[#allocation8] sm:$0xff]
    %v368 = vld [vmem:[#allocation8 + $0x8] sm:$0xff]
    %v369 = vld [vmem:[#allocation8 + $0x10] sm:$0xff]
    %v370 = vld [vmem:[#allocation8 + $0x18] sm:$0xff]
    %v371 = vld [vmem:[#allocation8 + $0x20] sm:$0xff]
    %v372 = vld [vmem:[#allocation8 + $0x28] sm:$0xff]
    %v373 = vld [vmem:[#allocation8 + $0x30] sm:$0xff]
    %v374 = vld [vmem:[#allocation8 + $0x38] sm:$0xff]
    %v375 = vld [vmem:[#allocation8 + $0x40] sm:$0xff]
    %v376 = vld [vmem:[#allocation8 + $0x48] sm:$0xff]
    %v377 = vld [vmem:[#allocation8 + $0x50] sm:$0xff]
    %v378 = vld [vmem:[#allocation8 + $0x58] sm:$0xff]
    %v379 = vld [vmem:[#allocation8 + $0x60] sm:$0xff]
    %v380 = vld [vmem:[#allocation8 + $0x68] sm:$0xff]
    %v381 = vld [vmem:[#allocation8 + $0x70] sm:$0xff]
    %v382 = vld [vmem:[#allocation8 + $0x78] sm:$0xff]
    %v383 = vld [vmem:[#allocation8 + $0x80] sm:$0xff]
    %v384 = vld [vmem:[#allocation8 + $0x88] sm:$0xff]
    %v385 = vld [vmem:[#allocation8 + $0x90] sm:$0xff]
    %v386 = vld [vmem:[#allocation8 + $0x98] sm:$0xff]
    %v387 = vld [vmem:[#allocation8 + $0xa0] sm:$0xff]
    %v388 = vld [vmem:[#allocation8 + $0xa8] sm:$0xff]
    %v389 = vld [vmem:[#allocation8 + $0xb0] sm:$0xff]
    %v390 = vld [vmem:[#allocation8 + $0xb8] sm:$0xff]
    %v391 = vld [vmem:[#allocation8 + $0xc0] sm:$0xff]
    %v392 = vld [vmem:[#allocation8 + $0xc8] sm:$0xff]
    %v393 = vld [vmem:[#allocation8 + $0xd0] sm:$0xff]
    %v394 = vld [vmem:[#allocation8 + $0xd8] sm:$0xff]
    %v395 = vld [vmem:[#allocation8 + $0xe0] sm:$0xff]
    %v396 = vld [vmem:[#allocation8 + $0xe8] sm:$0xff]
    %v397 = vld [vmem:[#allocation8 + $0xf0] sm:$0xff]
    %v398 = vld [vmem:[#allocation8 + $0xf8] sm:$0xff]
    %v399 = vld [vmem:[%s4] sm:$0x3]
    %v401 = vperm.slane %v399, 0
    %v402 = vperm.slane %v399, 1
    %v437 = vunpack.c.l.b16 %v367
    %v438 = vunpack.c.h.b16 %v367
    %v439 = vunpack.c.l.b16 %v368
    %v440 = vunpack.c.h.b16 %v368
    %v441 = vunpack.c.l.b16 %v369
    %v442 = vunpack.c.h.b16 %v369
    %v443 = vunpack.c.l.b16 %v370
    %v444 = vunpack.c.h.b16 %v370
    %v445 = vunpack.c.l.b16 %v371
    %v446 = vunpack.c.h.b16 %v371
    %v447 = vunpack.c.l.b16 %v372
    %v448 = vunpack.c.h.b16 %v372
    %v449 = vunpack.c.l.b16 %v373
    %v450 = vunpack.c.h.b16 %v373
    %v451 = vunpack.c.l.b16 %v374
    %v452 = vunpack.c.h.b16 %v374
    %v453 = vunpack.c.l.b16 %v375
    %v454 = vunpack.c.h.b16 %v375
    %v455 = vunpack.c.l.b16 %v376
    %v456 = vunpack.c.h.b16 %v376
    %v457 = vunpack.c.l.b16 %v377
    %v458 = vunpack.c.h.b16 %v377
    %v459 = vunpack.c.l.b16 %v378
    %v460 = vunpack.c.h.b16 %v378
    %v461 = vunpack.c.l.b16 %v379
    %v462 = vunpack.c.h.b16 %v379
    %v463 = vunpack.c.l.b16 %v380
    %v464 = vunpack.c.h.b16 %v380
    %v465 = vunpack.c.l.b16 %v381
    %v466 = vunpack.c.h.b16 %v381
    %v467 = vunpack.c.l.b16 %v382
    %v468 = vunpack.c.h.b16 %v382
    %v469 = vunpack.c.l.b16 %v383
    %v470 = vunpack.c.h.b16 %v383
    %v471 = vunpack.c.l.b16 %v384
    %v472 = vunpack.c.h.b16 %v384
    %v473 = vunpack.c.l.b16 %v385
    %v474 = vunpack.c.h.b16 %v385
    %v475 = vunpack.c.l.b16 %v386
    %v476 = vunpack.c.h.b16 %v386
    %v477 = vunpack.c.l.b16 %v387
    %v478 = vunpack.c.h.b16 %v387
    %v479 = vunpack.c.l.b16 %v388
    %v480 = vunpack.c.h.b16 %v388
    %v481 = vunpack.c.l.b16 %v389
    %v482 = vunpack.c.h.b16 %v389
    %v483 = vunpack.c.l.b16 %v390
    %v484 = vunpack.c.h.b16 %v390
    %v485 = vunpack.c.l.b16 %v391
    %v486 = vunpack.c.h.b16 %v391
    %v487 = vunpack.c.l.b16 %v392
    %v488 = vunpack.c.h.b16 %v392
    %v489 = vunpack.c.l.b16 %v393
    %v490 = vunpack.c.h.b16 %v393
    %v491 = vunpack.c.l.b16 %v394
    %v492 = vunpack.c.h.b16 %v394
    %v493 = vunpack.c.l.b16 %v395
    %v494 = vunpack.c.h.b16 %v395
    %v495 = vunpack.c.l.b16 %v396
    %v496 = vunpack.c.h.b16 %v396
    %v497 = vunpack.c.l.b16 %v397
    %v498 = vunpack.c.h.b16 %v397
    %v499 = vunpack.c.l.b16 %v398
    %v500 = vunpack.c.h.b16 %v398
    %v501 = vpack.c.b16 %v439, %v437
    %v502 = vpack.c.b16 %v440, %v438
    %v503 = vpack.c.b16 %v443, %v441
    %v504 = vpack.c.b16 %v444, %v442
    %v505 = vpack.c.b16 %v447, %v445
    %v506 = vpack.c.b16 %v448, %v446
    %v507 = vpack.c.b16 %v451, %v449
    %v508 = vpack.c.b16 %v452, %v450
    %v509 = vpack.c.b16 %v455, %v453
    %v510 = vpack.c.b16 %v456, %v454
    %v511 = vpack.c.b16 %v459, %v457
    %v512 = vpack.c.b16 %v460, %v458
    %v513 = vpack.c.b16 %v463, %v461
    %v514 = vpack.c.b16 %v464, %v462
    %v515 = vpack.c.b16 %v467, %v465
    %v516 = vpack.c.b16 %v468, %v466
    %v517 = vpack.c.b16 %v471, %v469
    %v518 = vpack.c.b16 %v472, %v470
    %v519 = vpack.c.b16 %v475, %v473
    %v520 = vpack.c.b16 %v476, %v474
    %v521 = vpack.c.b16 %v479, %v477
    %v522 = vpack.c.b16 %v480, %v478
    %v523 = vpack.c.b16 %v483, %v481
    %v524 = vpack.c.b16 %v484, %v482
    %v525 = vpack.c.b16 %v487, %v485
    %v526 = vpack.c.b16 %v488, %v486
    %v527 = vpack.c.b16 %v491, %v489
    %v528 = vpack.c.b16 %v492, %v490
    %v529 = vpack.c.b16 %v495, %v493
    %v530 = vpack.c.b16 %v496, %v494
    %v531 = vpack.c.b16 %v499, %v497
    %v532 = vpack.c.b16 %v500, %v498
    %565 = vmatpush.bf16.msra.mxu0 %v515
    %566 = vmatpush.bf16.msra.mxu0 %v513
    %567 = vmatpush.bf16.msra.mxu0 %v511
    %568 = vmatpush.bf16.msra.mxu0 %v509
    %569 = vmatpush.bf16.msra.mxu0 %v507
    %570 = vmatpush.bf16.msra.mxu0 %v505
    %571 = vmatpush.bf16.msra.mxu0 %v503
    %572 = vmatpush.bf16.msra.mxu0 %v501
    %573 = vmatmul.bf16.gmra.mxu0 %v365
    %v574 = vpop.f32.mrf.mxu0
    %v575 = vadd.f32 %v401, %v574
    %v576 = vpop.f32.mrf.mxu0
    %v577 = vadd.f32 %v401, %v576
    %578 = vdwg.mxu0
    %579 = vmatpush.bf16.msra.mxu0 %v531
    %580 = vmatpush.bf16.msra.mxu0 %v529
    %581 = vmatpush.bf16.msra.mxu0 %v527
    %582 = vmatpush.bf16.msra.mxu0 %v525
    %583 = vmatpush.bf16.msra.mxu0 %v523
    %584 = vmatpush.bf16.msra.mxu0 %v521
    %585 = vmatpush.bf16.msra.mxu0 %v519
    %586 = vmatpush.bf16.msra.mxu0 %v517
    %587 = vmatmul.bf16.gmra.mxu0 %v366
    %v588 = vpop.f32.mrf.mxu0
    %v589 = vadd.f32 %v575, %v588
    %v590 = vpop.f32.mrf.mxu0
    %v591 = vadd.f32 %v577, %v590
    %592 = vdwg.mxu0
    %593 = vmatpush.bf16.msra.mxu0 %v516
    %594 = vmatpush.bf16.msra.mxu0 %v514
    %595 = vmatpush.bf16.msra.mxu0 %v512
    %596 = vmatpush.bf16.msra.mxu0 %v510
    %597 = vmatpush.bf16.msra.mxu0 %v508
    %598 = vmatpush.bf16.msra.mxu0 %v506
    %599 = vmatpush.bf16.msra.mxu0 %v504
    %600 = vmatpush.bf16.msra.mxu0 %v502
    %601 = vmatmul.bf16.gmra.mxu0 %v365
    %v602 = vpop.f32.mrf.mxu0
    %v603 = vadd.f32 %v402, %v602
    %v604 = vpop.f32.mrf.mxu0
    %v605 = vadd.f32 %v402, %v604
    %606 = vdwg.mxu0
    %607 = vmatpush.bf16.msra.mxu0 %v532
    %608 = vmatpush.bf16.msra.mxu0 %v530
    %609 = vmatpush.bf16.msra.mxu0 %v528
    %610 = vmatpush.bf16.msra.mxu0 %v526
    %611 = vmatpush.bf16.msra.mxu0 %v524
    %612 = vmatpush.bf16.msra.mxu0 %v522
    %613 = vmatpush.bf16.msra.mxu0 %v520
    %614 = vmatpush.bf16.msra.mxu0 %v518
    %615 = vmatmul.bf16.gmra.mxu0 %v366
    %v616 = vpop.f32.mrf.mxu0
    %v617 = vadd.f32 %v603, %v616
    %v618 = vpop.f32.mrf.mxu0
    %v619 = vadd.f32 %v605, %v618
    %620 = vdwg.mxu0
    %v621 = vadd.f32 %v589, %v617
    %622 = vadd.xlane.f32.xlu0 %v621
    %v623 = vpop.xlane.xlu0 %622
    %v624 = vadd.f32 %v591, %v619
    %625 = vadd.xlane.f32.xlu0 %v624
    %v626 = vpop.xlane.xlu0 %625
    %v627 = vrcp.pop 256.0
    %v628 = vmul.f32 256.0, %v627
    %v629 = vsub.f32 1.0, %v628
    %v630 = vmul.f32 %v627, %v629
    %v631 = vadd.f32 %v627, %v630
    %vm632 = vweird.f32 %v627
    %v633 = vsel %vm632, %v627, %v631
    %v634 = vmul.f32 %v623, %v633
    %v635 = vmul.f32 %v626, %v633
    %v636 = vmul.f32 %v589, %v589
    %v637 = vmul.f32 %v617, %v617
    %v638 = vmul.f32 %v591, %v591
    %v639 = vmul.f32 %v619, %v619
    %v640 = vadd.f32 %v636, %v637
    %641 = vadd.xlane.f32.xlu0 %v640
    %v642 = vpop.xlane.xlu0 %641
    %v643 = vadd.f32 %v638, %v639
    %644 = vadd.xlane.f32.xlu0 %v643
    %v645 = vpop.xlane.xlu0 %644
    %v646 = vmul.f32 %v642, %v633
    %v647 = vmul.f32 %v645, %v633
    %v648 = vmul.f32 %v634, %v634
    %v649 = vmul.f32 %v635, %v635
    %v650 = vsub.f32 %v646, %v648
    %v651 = vsub.f32 %v647, %v649
    %v652 = vadd.f32 %v650, 1e-05
    %v653 = vadd.f32 %v651, 1e-05
    %v654 = vrsqrt.pop %v652
    %v655 = vmul.f32 %v654, %v652
    %v656 = vmul.f32 %v655, %v654
    %v657 = vmul.f32 0.5, %v656
    %v658 = vsub.f32 1.5, %v657
    %v659 = vmul.f32 %v654, %v658
    %vm660 = vweird.f32 %v652
    %vm661 = vweird.f32 %v654
    %vm662 = vmor %vm660, %vm661
    %v663 = vsel %vm662, %v654, %v659
    %v664 = vrsqrt.pop %v653
    %v665 = vmul.f32 %v664, %v653
    %v666 = vmul.f32 %v665, %v664
    %v667 = vmul.f32 0.5, %v666
    %v668 = vsub.f32 1.5, %v667
    %v669 = vmul.f32 %v664, %v668
    %vm670 = vweird.f32 %v653
    %vm671 = vweird.f32 %v664
    %vm672 = vmor %vm670, %vm671
    %v673 = vsel %vm672, %v664, %v669
    %v674 = vsub.f32 %v589, %v634
    %v675 = vsub.f32 %v617, %v634
    %v676 = vsub.f32 %v591, %v635
    %v677 = vsub.f32 %v619, %v635
    %v678 = vld [vmem:[%s5] sm:$0x3]
    %v680 = vperm.slane %v678, 0
    %v681 = vperm.slane %v678, 1
    %v684 = vmul.f32 %v663, %v680
    %v685 = vmul.f32 %v663, %v681
    %v686 = vmul.f32 %v673, %v680
    %v687 = vmul.f32 %v673, %v681
    %v688 = vmul.f32 %v674, %v684
    %v689 = vmul.f32 %v675, %v685
    %v690 = vmul.f32 %v676, %v686
    %v691 = vmul.f32 %v677, %v687
    %v692 = vld [vmem:[#allocation10] sm:$0x3]
    %v694 = vperm.slane %v692, 0
    %v695 = vperm.slane %v692, 1
    %v698 = vadd.f32 %v688, %v694
    %v699 = vadd.f32 %v689, %v695
    %v700 = vadd.f32 %v690, %v694
    %v701 = vadd.f32 %v691, %v695
    %v702 = vadd.f32 %v698, %v101
    %v703 = vadd.f32 %v699, %v102
    %v704 = vadd.f32 %v700, %v103
    %v705 = vadd.f32 %v701, %v104
    %706 = vst [vmem:[#allocation11] sm:$0xff] %v702
    %707 = vst [vmem:[#allocation11 + $0x8] sm:$0xff] %v703
    %708 = vst [vmem:[#allocation11 + $0x10] sm:$0xff] %v704
    %709 = vst [vmem:[#allocation11 + $0x18] sm:$0xff] %v705
    // Predicated region
    $region50: #{tpu_custom_call.1} parent=1 // pred_check
      _
    $region51: #{tpu_custom_call.1} parent=1 // pred_check_branch
      %711 = sbr.rel (0) target = $region53
    $region52: #{tpu_custom_call.1} parent=1 // pred_region
      %713 = vsyncadd [#allocation4], 0
      %s714 = sshll.u32 [#allocation11], 4
      %s715 = int_to_ptr.vmem [resolvable:$true] %s714
      %s716 = sshll.u32 %s7, 4
      %s717 = int_to_ptr.hbm [resolvable:$true] %s716
      %722 = dma.vmem_to_hbm [thread:$0]  %s715, 512, %s717, [#allocation4], 256, 256, 16
    $region53: #{tpu_custom_call.1} parent=1 // pred_fallthru
      _
    // Predicated region
    $region54: #{tpu_custom_call.1} parent=1 // pred_check
      _
    $region55: #{tpu_custom_call.1} parent=1 // pred_check_branch
      %724 = sbr.rel (0) target = $region57
    $region56: #{tpu_custom_call.1} parent=1 // pred_region
      %726 = dma.done [#allocation4], 512
    $region57: #{tpu_custom_call.1} parent=1 // pred_fallthru
      _
    %727 = vsyncpa [#allocation3], 1
    %728 = vsyncpa [#allocation6], 1
    %729 = vsyncpa [#allocation9], 1
    %730 = vsyncpa [#allocation4], 1

</llo_original>
